<compile_context>
chip_gen: v7x
topology: tpu7x:2x2x1
jax: 0.10.0
libtpu: 0.0.40
codegen_flags: <defaults>
</compile_context>

<pallas_src>
import functools

import jax
import jax.numpy as jnp
from jax import lax
from jax.experimental import pallas as pl
from jax.experimental.pallas import tpu as pltpu


_OUT_WIDTH = 128          # lane-dense packed output width: [scores | idx bits]
_TARGET_BLOCK = 2 << 20   # ~2 MiB of input per grid step (fits all generations)


def _round_up(a, b):
    return (a + b - 1) // b * b


def _detect_peaks_kernel(x_ref, out_ref, *, kernel_size, topk, vabs, nt_real):
    half = kernel_size // 2
    neg_inf = jnp.float32(-jnp.inf)

    x = x_ref[...].astype(jnp.float32)
    tm, nt_pad = x.shape

    # (1, nt_pad) column iota; broadcasts over sublanes, keeps vreg pressure low.
    col = lax.broadcasted_iota(jnp.int32, (1, nt_pad), 1)

    if vabs:
        x = jnp.abs(x)
    # Padded tail columns act exactly like max_pool2d's -inf padding.
    x = jnp.where(col < nt_real, x, neg_inf)

    # Sliding-window max in a frame shifted right by `half`:
    #   S[i] = max_{e=0..K-1} x[i-e]
    # van Herk doubling -> O(log K) rolls, all with small positive shifts.
    # Cyclic wrap at valid columns only ever pulls -inf from the padded tail
    # (nt_pad >= nt_real + half), so no per-tap validity masks are needed.
    S = x
    p = 1
    while 2 * p <= kernel_size:
        S = jnp.maximum(S, pltpu.roll(S, shift=p, axis=1))
        p *= 2
    if p < kernel_size:
        S = jnp.maximum(S, pltpu.roll(S, shift=kernel_size - p, axis=1))

    # Align x to the same shifted frame: xr[i] = x[i - half].
    xr = pltpu.roll(x, shift=half, axis=1) if half > 0 else x

    keep = S == xr                                   # peak mask (exact equality)
    valid = jnp.logical_and(col >= half, col < nt_real + half)
    masked = jnp.where(valid, jnp.where(keep, xr, 0.0), neg_inf)

    # Iterative top-k along lanes (topk is small -> fully unrolled).
    sentinel = jnp.int32(nt_pad)
    work = masked
    vals, idxs = [], []
    for _ in range(topk):
        v = jnp.max(work, axis=1, keepdims=True)                     # (tm, 1)
        i = jnp.min(jnp.where(work == v, col, sentinel),
                    axis=1, keepdims=True)                           # (tm, 1) int32
        vals.append(v)
        idxs.append(i - half)            # undo frame shift -> true time index
        work = jnp.where(col == i, neg_inf, work)

    # Single packed lane-dense (tm, 128) store:
    #   lanes [0, topk)        -> scores (f32)
    #   lanes [topk, 2*topk)   -> int32 indices bit-cast into the f32 container
    # lanes >= 2*topk are zero filler (sliced away by the wrapper).
    col_out = lax.broadcasted_iota(jnp.int32, (1, _OUT_WIDTH), 1)
    score_out = jnp.zeros((tm, _OUT_WIDTH), jnp.float32)
    idx_out = jnp.zeros((tm, _OUT_WIDTH), jnp.int32)
    for k in range(topk):
        score_out = jnp.where(col_out == k, vals[k], score_out)
        idx_out = jnp.where(col_out == topk + k, idxs[k], idx_out)
    out_ref[...] = jnp.where(col_out < topk, score_out,
                             pltpu.bitcast(idx_out, jnp.float32))


def detect_peaks_topk(xcorr, *, kernel=3, stride=1, topk=2, vabs=True):
    """Pallas implementation of the DetectPeaksCC peak-picking hot path.

    Returns (topk_score, topk_idx) of shape (nb, nc, nx, topk), equivalent to
    torch.topk(xcorr_abs * (max_pool2d(xcorr_abs) == xcorr_abs), topk, sorted=True).
    """
    assert stride == 1, "only stride=1 keeps pooled length == nt (module requirement)"
    assert kernel % 2 == 1, "kernel must be odd so pooled length == nt"
    assert 1 <= topk and 2 * topk <= _OUT_WIDTH

    nb, nc, nx, nt = xcorr.shape
    half = kernel // 2
    rows = nb * nc * nx

    # Lane axis: pad nt to a multiple of 128 with >= half slack columns.
    nt_pad = _round_up(nt + half, 128)

    # Sublane axis: derive the grid first (>= 2 steps so both v7x TensorCores
    # get work; each step's input block ~<= 2 MiB), then split rows evenly so
    # there is no wasted full tile of padded rows.
    in_bytes = jnp.dtype(xcorr.dtype).itemsize
    tm_budget = max(8, min(1024, (_TARGET_BLOCK // (nt_pad * in_bytes)) // 8 * 8))
    grid = max(2, pl.cdiv(rows, tm_budget))
    tm = max(8, _round_up(pl.cdiv(rows, grid), 8))
    rows_pad = tm * grid

    # No wrapper-side dtype cast: DMA the original dtype, widen in-register.
    x2d = xcorr.reshape(rows, nt)
    x2d = jnp.pad(x2d, ((0, rows_pad - rows), (0, nt_pad - nt)))

    kern = functools.partial(_detect_peaks_kernel, kernel_size=kernel,
                             topk=topk, vabs=vabs, nt_real=nt)

    n_rolls = max(kernel - 1, 1).bit_length() + 1
    cost = pl.CostEstimate(
        flops=rows_pad * nt_pad * (2 * n_rolls + 6 * topk + 6),
        transcendentals=0,
        bytes_accessed=rows_pad * nt_pad * in_bytes + rows_pad * _OUT_WIDTH * 4)

    packed = pl.pallas_call(
        kern,
        out_shape=jax.ShapeDtypeStruct((rows_pad, _OUT_WIDTH), jnp.float32),
        grid_spec=pltpu.PrefetchScalarGridSpec(
            num_scalar_prefetch=0,
            grid=(grid,),
            in_specs=[pl.BlockSpec((tm, nt_pad), lambda i: (i, 0))],
            out_specs=pl.BlockSpec((tm, _OUT_WIDTH), lambda i: (i, 0)),
        ),
        compiler_params=pltpu.CompilerParams(
            dimension_semantics=("parallel",),
            vmem_limit_bytes=32 * 1024 * 1024),
        cost_estimate=cost,
    )(x2d)

    topk_score = packed[:rows, :topk].reshape(nb, nc, nx, topk)
    topk_idx = lax.bitcast_convert_type(
        packed[:rows, topk:2 * topk], jnp.int32).reshape(nb, nc, nx, topk)
    return topk_score, topk_idx


def detect_peaks_cc(xcorr, nlag, *, kernel=3, stride=1, topk=2, vabs=True,
                    sampling_rate=100.0):
    """Forward pass of DetectPeaksCC (interp=False path).

    Peak picking runs in the Pallas kernel; the cheap per-pair reduction
    (weight, channel argmax, shift/dt) is plain-JAX glue matching the numpy
    post-processing in the module.
    """
    assert topk >= 2, "weight needs the top-2 scores"
    topk_score, topk_idx = detect_peaks_topk(
        xcorr, kernel=kernel, stride=stride, topk=topk, vabs=vabs)

    s0 = topk_score[..., 0]
    s1 = topk_score[..., 1]
    i0 = topk_idx[..., 0]
    weight = (0.1 + 3.0 * (s0 - s1)) * s0 ** 2

    # TODO(synk): CubicSpline sub-sample interpolation (interp=True) is host-side
    #             scipy; indices/scores are returned at integer-lag resolution.
    ch = jnp.argmax(weight, axis=1, keepdims=True)          # best channel per pair
    cc_max = jnp.take_along_axis(s0, ch, axis=1)
    cc_shift = jnp.take_along_axis(i0, ch, axis=1) - nlag
    cc_weight = jnp.take_along_axis(weight, ch, axis=1)
    cc_dt = cc_shift.astype(jnp.float32) / sampling_rate
    # TODO(synk): traveltime adjustment (meta['info1']/['info2']) is host-side
    #             metadata bookkeeping with no tensor compute.
    return {"cc_max": cc_max, "cc_weight": cc_weight, "cc_dt": cc_dt,
            "cc_shift": cc_shift, "topk_score": topk_score, "topk_idx": topk_idx}


def _reference_topk(xcorr, *, kernel, topk, vabs):
    x = jnp.abs(xcorr) if vabs else xcorr
    half = kernel // 2
    nt = x.shape[-1]
    pad = jnp.pad(x, ((0, 0), (0, 0), (0, 0), (half, half)),
                  constant_values=-jnp.inf)
    windows = jnp.stack([pad[..., d:d + nt] for d in range(kernel)], axis=0)
    smax = jnp.max(windows, axis=0)
    masked = jnp.where(smax == x, x, 0.0)
    vals, idxs = lax.top_k(masked, topk)
    return vals, idxs


if __name__ == "__main__":
    key = jax.random.PRNGKey(0)
    # nt = 2*nlag + 1 (odd), matching the usual cross-correlation layout.
    nb, nc, nx, nt = 2, 4, 16, 121
    topk = 2
    nlag = nt // 2

    xcorr = jax.random.normal(key, (nb, nc, nx, nt), dtype=jnp.float32)

    for kernel in (3, 7):   # exercise both the doubling path and the combine step
        score, idx = detect_peaks_topk(xcorr, kernel=kernel, topk=topk, vabs=True)
        jax.block_until_ready((score, idx))
        ref_score, ref_idx = _reference_topk(xcorr, kernel=kernel, topk=topk, vabs=True)
        assert jnp.allclose(score, ref_score, rtol=1e-6, atol=1e-6), \
            f"score mismatch (kernel={kernel})"
        assert bool(jnp.all(idx == ref_idx)), f"index mismatch (kernel={kernel})"

    out = detect_peaks_cc(xcorr, nlag, kernel=3, topk=topk, vabs=True,
                          sampling_rate=100.0)
    jax.block_until_ready(out)

    print("KERNEL_OK")
</pallas_src>

<mosaic_0001>
module attributes {stable_mosaic.version = 11 : i64} {
  func.func @_detect_peaks_kernel(%arg0: i32, %arg1: memref<64x128xf32, #tpu.memory_space<vmem>>, %arg2: memref<64x128xf32, #tpu.memory_space<vmem>>) attributes {dimension_semantics = [#tpu.dimension_semantics<parallel>], iteration_bounds = array<i64: 2>, scalar_prefetch = 0 : i64, scratch_operands = 0 : i64, tpu.core_type = #tpu.core_type<tc>, window_params = [{transform_indices = @transform_0, window_bounds = array<i64: 64, 128>}, {transform_indices = @transform_1, window_bounds = array<i64: 64, 128>}]} {
    %c0 = arith.constant 0 : index
    %c0_0 = arith.constant 0 : index
    %0 = vector.load %arg1[%c0, %c0_0] : memref<64x128xf32, #tpu.memory_space<vmem>>, vector<64x128xf32>
    %1 = tpu.iota {dimensions = array<i32: 1>} : vector<1x128xi32>
    %2 = math.absf %0 : vector<64x128xf32>
    %c121_i32 = arith.constant 121 : i32
    %3 = vector.broadcast %c121_i32 : i32 to vector<1x128xi32>
    %4 = arith.cmpi slt, %1, %3 : vector<1x128xi32>
    %cst = arith.constant 0xFF800000 : f32
    %5 = vector.shape_cast %4 : vector<1x128xi1> to vector<1x128xi1>
    %6 = vector.broadcast %5 : vector<1x128xi1> to vector<64x128xi1>
    %7 = vector.broadcast %cst : f32 to vector<64x128xf32>
    %8 = arith.select %6, %2, %7 : vector<64x128xi1>, vector<64x128xf32>
    %c1_i32 = arith.constant 1 : i32
    %9 = tpu.dynamic_rotate %8 by %c1_i32 dim 1 : vector<64x128xf32>, i32 -> vector<64x128xf32>
    %10 = arith.maximumf %8, %9 : vector<64x128xf32>
    %c1_i32_1 = arith.constant 1 : i32
    %11 = tpu.dynamic_rotate %10 by %c1_i32_1 dim 1 : vector<64x128xf32>, i32 -> vector<64x128xf32>
    %12 = arith.maximumf %10, %11 : vector<64x128xf32>
    %c1_i32_2 = arith.constant 1 : i32
    %13 = tpu.dynamic_rotate %8 by %c1_i32_2 dim 1 : vector<64x128xf32>, i32 -> vector<64x128xf32>
    %14 = arith.cmpf oeq, %12, %13 : vector<64x128xf32>
    %c1_i32_3 = arith.constant 1 : i32
    %15 = vector.broadcast %c1_i32_3 : i32 to vector<1x128xi32>
    %16 = arith.cmpi sge, %1, %15 : vector<1x128xi32>
    %c122_i32 = arith.constant 122 : i32
    %17 = vector.broadcast %c122_i32 : i32 to vector<1x128xi32>
    %18 = arith.cmpi slt, %1, %17 : vector<1x128xi32>
    %19 = arith.andi %16, %18 : vector<1x128xi1>
    %cst_4 = arith.constant 0.000000e+00 : f32
    %20 = vector.broadcast %cst_4 : f32 to vector<64x128xf32>
    %21 = arith.select %14, %13, %20 : vector<64x128xi1>, vector<64x128xf32>
    %cst_5 = arith.constant 0xFF800000 : f32
    %22 = vector.shape_cast %19 : vector<1x128xi1> to vector<1x128xi1>
    %23 = vector.broadcast %22 : vector<1x128xi1> to vector<64x128xi1>
    %24 = vector.broadcast %cst_5 : f32 to vector<64x128xf32>
    %25 = arith.select %23, %21, %24 : vector<64x128xi1>, vector<64x128xf32>
    %cst_6 = arith.constant dense<0xFF800000> : vector<64xf32>
    %26 = vector.multi_reduction <maximumf>, %25, %cst_6 [1] : vector<64x128xf32> to vector<64xf32>
    %27 = vector.shape_cast %26 : vector<64xf32> to vector<64x1xf32>
    %28 = vector.broadcast %27 : vector<64x1xf32> to vector<64x128xf32>
    %29 = arith.cmpf oeq, %25, %28 : vector<64x128xf32>
    %c128_i32 = arith.constant 128 : i32
    %30 = vector.shape_cast %1 : vector<1x128xi32> to vector<1x128xi32>
    %31 = vector.broadcast %30 : vector<1x128xi32> to vector<64x128xi32>
    %32 = vector.broadcast %c128_i32 : i32 to vector<64x128xi32>
    %33 = arith.select %29, %31, %32 : vector<64x128xi1>, vector<64x128xi32>
    %cst_7 = arith.constant dense<2147483647> : vector<64xi32>
    %34 = vector.multi_reduction <minsi>, %33, %cst_7 [1] : vector<64x128xi32> to vector<64xi32>
    %35 = vector.shape_cast %34 : vector<64xi32> to vector<64x1xi32>
    %c1_i32_8 = arith.constant 1 : i32
    %36 = vector.broadcast %c1_i32_8 : i32 to vector<64x1xi32>
    %37 = arith.subi %35, %36 : vector<64x1xi32>
    %38 = vector.broadcast %1 : vector<1x128xi32> to vector<64x128xi32>
    %39 = vector.broadcast %35 : vector<64x1xi32> to vector<64x128xi32>
    %40 = arith.cmpi eq, %38, %39 : vector<64x128xi32>
    %cst_9 = arith.constant 0xFF800000 : f32
    %41 = vector.broadcast %cst_9 : f32 to vector<64x128xf32>
    %42 = arith.select %40, %41, %25 : vector<64x128xi1>, vector<64x128xf32>
    %cst_10 = arith.constant dense<0xFF800000> : vector<64xf32>
    %43 = vector.multi_reduction <maximumf>, %42, %cst_10 [1] : vector<64x128xf32> to vector<64xf32>
    %44 = vector.shape_cast %43 : vector<64xf32> to vector<64x1xf32>
    %45 = vector.broadcast %44 : vector<64x1xf32> to vector<64x128xf32>
    %46 = arith.cmpf oeq, %42, %45 : vector<64x128xf32>
    %c128_i32_11 = arith.constant 128 : i32
    %47 = vector.shape_cast %1 : vector<1x128xi32> to vector<1x128xi32>
    %48 = vector.broadcast %47 : vector<1x128xi32> to vector<64x128xi32>
    %49 = vector.broadcast %c128_i32_11 : i32 to vector<64x128xi32>
    %50 = arith.select %46, %48, %49 : vector<64x128xi1>, vector<64x128xi32>
    %cst_12 = arith.constant dense<2147483647> : vector<64xi32>
    %51 = vector.multi_reduction <minsi>, %50, %cst_12 [1] : vector<64x128xi32> to vector<64xi32>
    %52 = vector.shape_cast %51 : vector<64xi32> to vector<64x1xi32>
    %c1_i32_13 = arith.constant 1 : i32
    %53 = vector.broadcast %c1_i32_13 : i32 to vector<64x1xi32>
    %54 = arith.subi %52, %53 : vector<64x1xi32>
    %55 = tpu.iota {dimensions = array<i32: 1>} : vector<1x128xi32>
    %cst_14 = arith.constant 0.000000e+00 : f32
    %56 = vector.broadcast %cst_14 : f32 to vector<64x128xf32>
    %c0_i32 = arith.constant 0 : i32
    %57 = vector.broadcast %c0_i32 : i32 to vector<64x128xi32>
    %c0_i32_15 = arith.constant 0 : i32
    %58 = vector.broadcast %c0_i32_15 : i32 to vector<1x128xi32>
    %59 = arith.cmpi eq, %55, %58 : vector<1x128xi32>
    %60 = vector.shape_cast %59 : vector<1x128xi1> to vector<1x128xi1>
    %61 = vector.broadcast %60 : vector<1x128xi1> to vector<64x128xi1>
    %62 = vector.shape_cast %27 : vector<64x1xf32> to vector<64x1xf32>
    %63 = vector.broadcast %62 : vector<64x1xf32> to vector<64x128xf32>
    %64 = arith.select %61, %63, %56 : vector<64x128xi1>, vector<64x128xf32>
    %c2_i32 = arith.constant 2 : i32
    %65 = vector.broadcast %c2_i32 : i32 to vector<1x128xi32>
    %66 = arith.cmpi eq, %55, %65 : vector<1x128xi32>
    %67 = vector.shape_cast %66 : vector<1x128xi1> to vector<1x128xi1>
    %68 = vector.broadcast %67 : vector<1x128xi1> to vector<64x128xi1>
    %69 = vector.shape_cast %37 : vector<64x1xi32> to vector<64x1xi32>
    %70 = vector.broadcast %69 : vector<64x1xi32> to vector<64x128xi32>
    %71 = arith.select %68, %70, %57 : vector<64x128xi1>, vector<64x128xi32>
    %c1_i32_16 = arith.constant 1 : i32
    %72 = vector.broadcast %c1_i32_16 : i32 to vector<1x128xi32>
    %73 = arith.cmpi eq, %55, %72 : vector<1x128xi32>
    %74 = vector.shape_cast %73 : vector<1x128xi1> to vector<1x128xi1>
    %75 = vector.broadcast %74 : vector<1x128xi1> to vector<64x128xi1>
    %76 = vector.shape_cast %44 : vector<64x1xf32> to vector<64x1xf32>
    %77 = vector.broadcast %76 : vector<64x1xf32> to vector<64x128xf32>
    %78 = arith.select %75, %77, %64 : vector<64x128xi1>, vector<64x128xf32>
    %c3_i32 = arith.constant 3 : i32
    %79 = vector.broadcast %c3_i32 : i32 to vector<1x128xi32>
    %80 = arith.cmpi eq, %55, %79 : vector<1x128xi32>
    %81 = vector.shape_cast %80 : vector<1x128xi1> to vector<1x128xi1>
    %82 = vector.broadcast %81 : vector<1x128xi1> to vector<64x128xi1>
    %83 = vector.shape_cast %54 : vector<64x1xi32> to vector<64x1xi32>
    %84 = vector.broadcast %83 : vector<64x1xi32> to vector<64x128xi32>
    %85 = arith.select %82, %84, %71 : vector<64x128xi1>, vector<64x128xi32>
    %c2_i32_17 = arith.constant 2 : i32
    %86 = vector.broadcast %c2_i32_17 : i32 to vector<1x128xi32>
    %87 = arith.cmpi slt, %55, %86 : vector<1x128xi32>
    %88 = tpu.bitcast %85 : vector<64x128xi32> -> vector<64x128xf32>
    %89 = vector.shape_cast %87 : vector<1x128xi1> to vector<1x128xi1>
    %90 = vector.broadcast %89 : vector<1x128xi1> to vector<64x128xi1>
    %91 = arith.select %90, %78, %88 : vector<64x128xi1>, vector<64x128xf32>
    %c0_18 = arith.constant 0 : index
    %c0_19 = arith.constant 0 : index
    %92 = vector.load %arg2[%c0_18, %c0_19] : memref<64x128xf32, #tpu.memory_space<vmem>>, vector<64x128xf32>
    tpu.vector_store %arg2[%c0_18, %c0_19], %91 {strides = array<i32>} : memref<64x128xf32, #tpu.memory_space<vmem>>, vector<64x128xf32>,
    return
  }
  func.func @transform_0(%arg0: i32) -> (i32, i32) {
    %c0_i32 = arith.constant 0 : i32
    %c0_i32_0 = arith.constant 0 : i32
    return %arg0, %c0_i32 : i32, i32
  }
  func.func @transform_1(%arg0: i32) -> (i32, i32) {
    %c0_i32 = arith.constant 0 : i32
    %c0_i32_0 = arith.constant 0 : i32
    return %arg0, %c0_i32 : i32, i32
  }
}

</mosaic_0001>

<llo_original>
// kernel: tpu_custom_call.1
$region0: #{tpu_custom_call.1}
  #allocation0 [shape = 'u32[]', space=smem, size = 0x4, offset = 0x4, fixed_abs, tag = 'smem constant byte address 0x4 - core index']
  #allocation1 [shape = 'u32[144,128]{1,0:T(1,128)}', space=vmem, size = 0x12000, scoped, tag = 'internal scratch']
  %s0 = inlined_call_operand.hbm [shape: f32[128,128], index: 0, kind: input, shape index: {}]
  %s1 = inlined_call_operand.hbm [shape: f32[128,128], index: 1, kind: output, shape index: {}]
  %s2 = sld [smem:[#allocation0]]
  $region41: #{tpu_custom_call.1} parent=0
    _
  %s4 = ssub.s32 1, %s2
  %s5 = scalar_select 0, %s4, %s2
  $region1: #{tpu_custom_call.1} parent=0
    #allocation2 [shape = 'u8[65536]{0}', space=vmem, size = 0x10000, scoped, tag = 'input window, operand 0']
    #allocation3 [shape = 's32[2]{0}', space=sflag, size = 0x8, scoped, tag = 'scoped memory for tpu_custom_call.1']
    #allocation4 [shape = 's32[2]{0}', space=sflag, size = 0x8, scoped, tag = 'scoped memory for tpu_custom_call.1']
    #allocation5 [shape = 'u8[65536]{0}', space=vmem, size = 0x10000, scoped, tag = 'output window, operand 0']
    %6 = vsyncpa [#allocation3], 0
    %s7 = scalar_lea.sflag [#allocation3], 1
    %8 = vsyncpa %s7, 0
    %9 = vsyncpa [#allocation4], 0
    %s10 = scalar_lea.sflag [#allocation4], 1
    %11 = vsyncpa %s10, 0
    loop: start=0, step=1, limit=4
    $region2: #{tpu_custom_call.1} parent=1 // loop_pre_header
      _
    $region3: #{tpu_custom_call.1} parent=1 // loop_header
      %s13 = sphi 0, %s17
      %p14 = scmp.ge.s32.totalorder %s13, 4
      %s23 = sphi 0, %s25
      %s26 = sphi 0, %s23
      %s27 = sphi 0, %s26
      %s43 = sphi 0, %s27
      %s49 = sphi 0, %s51
      %s52 = sphi 0, %s49
      %s53 = sphi 0, %s52
      %s69 = sphi 0, %s53
    $region4: #{tpu_custom_call.1} parent=1 // loop_header_branch
      %16 = sbr.rel (%p14) target = $region8
    $region5: #{tpu_custom_call.1} parent=1 // loop_body
      %s18 = ssub.s32 %s13, 1
      %s19 = ssub.s32 %s13, 2
      %s20 = sadd.s32 %s13, 1
      %s21 = ssub.s32 %s13, %s20
      %p22 = scmp.eq.s32.totalorder %s21, 0
      %s24 = sadd.s32 %s23, 1
      %s25 = scalar_select %p22, %s23, %s24
      %p28 = pneg %p22
      %p29 = scmp.eq.s32.totalorder %s13, 1
      %p30 = por %p28, %p29
      %p31 = scmp.ne.s32.totalorder %s23, %s26
      %p32 = scmp.eq.s32.totalorder %s13, 0
      %p33 = por %p31, %p32
      %p34 = scmp.ne.s32.totalorder %s23, %s26
      %p35 = scmp.eq.s32.totalorder %s18, 1
      %p36 = por %p34, %p35
      %p37 = scmp.ne.s32.totalorder %s26, %s27
      %p38 = scmp.eq.s32.totalorder %s18, 0
      %p39 = por %p37, %p38
      %p40 = scmp.ne.s32.totalorder %s26, %s27
      %p41 = scmp.eq.s32.totalorder %s19, 1
      %p42 = por %p40, %p41
      %p44 = scmp.ne.s32.totalorder %s27, %s43
      %p45 = scmp.eq.s32.totalorder %s19, 0
      %p46 = por %p44, %p45
      %s47 = ssub.s32 %s13, %s20
      %p48 = scmp.eq.s32.totalorder %s47, 0
      %s50 = sadd.s32 %s49, 1
      %s51 = scalar_select %p48, %s49, %s50
      %p54 = pneg %p48
      %p55 = scmp.eq.s32.totalorder %s13, 1
      %p56 = por %p54, %p55
      %p57 = scmp.ne.s32.totalorder %s49, %s52
      %p58 = scmp.eq.s32.totalorder %s13, 0
      %p59 = por %p57, %p58
      %p60 = scmp.ne.s32.totalorder %s49, %s52
      %p61 = scmp.eq.s32.totalorder %s18, 1
      %p62 = por %p60, %p61
      %p63 = scmp.ne.s32.totalorder %s52, %s53
      %p64 = scmp.eq.s32.totalorder %s18, 0
      %p65 = por %p63, %p64
      %p66 = scmp.ne.s32.totalorder %s52, %s53
      %p67 = scmp.eq.s32.totalorder %s19, 1
      %p68 = por %p66, %p67
      %p70 = scmp.ne.s32.totalorder %s53, %s69
      %p71 = scmp.eq.s32.totalorder %s19, 0
      %p72 = por %p70, %p71
      %p73 = scmp.le.s32.totalorder 1, %s13
      %p74 = scmp.lt.s32.totalorder %s13, 3
      %p75 = pnand %p73, %p74
      %p76 = pneg %p75
      // Predicated region
      $region9: #{tpu_custom_call.1} parent=5 // pred_check
        _
      $region10: #{tpu_custom_call.1} parent=5 // pred_check_branch
        %78 = sbr.rel (%p75) target = $region12
      $region11: #{tpu_custom_call.1} parent=5 // pred_region
        %s79 = ssub.s32 %s13, 1
      $region12: #{tpu_custom_call.1} parent=5 // pred_fallthru
        _
      %p80 = scmp.lt.s32.totalorder %s13, 2
      // Predicated region
      $region13: #{tpu_custom_call.1} parent=5 // pred_check
        %p81 = pneg %p80
      $region14: #{tpu_custom_call.1} parent=5 // pred_check_branch
        %83 = sbr.rel (%p81) target = $region16
      $region15: #{tpu_custom_call.1} parent=5 // pred_region
        // Predicated region
        $region17: #{tpu_custom_call.1} parent=15 // pred_check
          %p84 = pneg %p33
        $region18: #{tpu_custom_call.1} parent=15 // pred_check_branch
          %86 = sbr.rel (%p84) target = $region20
        $region19: #{tpu_custom_call.1} parent=15 // pred_region
          %s87 = sand.u32 %s23, 1
          %s88 = scalar_lea.sflag [#allocation3], %s87
          %s89 = sand.u32 %s23, 1
          %s90 = smul.addr %s89, 64
          %s91 = scalar_lea.vmem [#allocation2], %s90
          %s92 = smul.u32 8, %s13
          %s94 = ssub.s32 1024, 1024
          %95 = vsyncadd %s88, %s94
          %s96 = smul.addr %s92, 128
          %s97 = scalar_lea.hbm %s0, %s96
          %s98 = sshll.u32 %s91, 4
          %s99 = int_to_ptr.vmem [resolvable:$true] %s98
          %104 = dma.hbm_to_vmem [thread:$0]  %s97, 1024, %s99, %s88, 128, 128, 8
        $region20: #{tpu_custom_call.1} parent=15 // pred_fallthru
          _
      $region16: #{tpu_custom_call.1} parent=5 // pred_fallthru
        _
      %p105 = scmp.le.s32.totalorder 1, %s13
      %p106 = scmp.lt.s32.totalorder %s13, 3
      %p107 = pnand %p105, %p106
      %p108 = pneg %p107
      // Predicated region
      $region21: #{tpu_custom_call.1} parent=5 // pred_check
        _
      $region22: #{tpu_custom_call.1} parent=5 // pred_check_branch
        %110 = sbr.rel (%p107) target = $region24
      $region23: #{tpu_custom_call.1} parent=5 // pred_region
        %s111 = ssub.s32 %s13, 1
        %s112 = sand.u32 %s26, 1
        %s113 = scalar_lea.sflag [#allocation3], %s112
        %s114 = sand.u32 %s26, 1
        %s115 = smul.addr %s114, 64
        %s116 = scalar_lea.vmem [#allocation2], %s115
        // Predicated region
        $region25: #{tpu_custom_call.1} parent=23 // pred_check
          %p117 = pneg %p39
        $region26: #{tpu_custom_call.1} parent=23 // pred_check_branch
          %119 = sbr.rel (%p117) target = $region28
        $region27: #{tpu_custom_call.1} parent=23 // pred_region
          %120 = dma.done %s113, 1024
        $region28: #{tpu_custom_call.1} parent=23 // pred_fallthru
          _
        %s121 = sand.u32 %s26, 1
        %s122 = scalar_lea.sflag [#allocation3], %s121
        %s123 = sand.u32 %s26, 1
        %s124 = smul.addr %s123, 64
        %s125 = scalar_lea.vmem [#allocation2], %s124
        %p126 = pneg %p39
        %p127 = pneg %p36
        %p128 = pneg %p65
        %p129 = pneg %p62
        %s130 = sand.u32 %s52, 1
        %s131 = scalar_lea.sflag [#allocation4], %s130
        %s132 = sand.u32 %s52, 1
        %s133 = smul.addr %s132, 64
        %s134 = scalar_lea.vmem [#allocation5], %s133
        %s135 = smul.u32 8, %s18
        %s136 = smul.u32 8, %s18
        %v137 = vld [vmem:[%s116] sm:$0xff]
        %v138 = vld [vmem:[%s116 + $0x8] sm:$0xff]
        %v139 = vld [vmem:[%s116 + $0x10] sm:$0xff]
        %v140 = vld [vmem:[%s116 + $0x18] sm:$0xff]
        %v141 = vld [vmem:[%s116 + $0x20] sm:$0xff]
        %v142 = vld [vmem:[%s116 + $0x28] sm:$0xff]
        %v143 = vld [vmem:[%s116 + $0x30] sm:$0xff]
        %v144 = vld [vmem:[%s116 + $0x38] sm:$0xff]
        %v145 = vlaneseq
        %v146 = vand.u32 %v145, 127
        %v147 = vand.u32 2147483647, %v137
        %v148 = vand.u32 2147483647, %v138
        %v149 = vand.u32 2147483647, %v139
        %v150 = vand.u32 2147483647, %v140
        %v151 = vand.u32 2147483647, %v141
        %v152 = vand.u32 2147483647, %v142
        %v153 = vand.u32 2147483647, %v143
        %v154 = vand.u32 2147483647, %v144
        %vm155 = vcmp.lt.s32.totalorder %v146, 121
        %v156 = vsel %vm155, 1, 0
        %vm157 = vcmp.eq.s32.totalorder %v156, 1
        %v158 = vsel %vm157, %v147, -inf
        %v159 = vsel %vm157, %v148, -inf
        %v160 = vsel %vm157, %v149, -inf
        %v161 = vsel %vm157, %v150, -inf
        %v162 = vsel %vm157, %v151, -inf
        %v163 = vsel %vm157, %v152, -inf
        %v164 = vsel %vm157, %v153, -inf
        %v165 = vsel %vm157, %v154, -inf
        %166 = vrot.lane.b32.xlu0 %v158, 1
        %v167 = vpop.permute.xlu0 %166
        %168 = vrot.lane.b32.xlu0 %v159, 1
        %v169 = vpop.permute.xlu0 %168
        %170 = vrot.lane.b32.xlu0 %v160, 1
        %v171 = vpop.permute.xlu0 %170
        %172 = vrot.lane.b32.xlu0 %v161, 1
        %v173 = vpop.permute.xlu0 %172
        %174 = vrot.lane.b32.xlu0 %v162, 1
        %v175 = vpop.permute.xlu0 %174
        %176 = vrot.lane.b32.xlu0 %v163, 1
        %v177 = vpop.permute.xlu0 %176
        %178 = vrot.lane.b32.xlu0 %v164, 1
        %v179 = vpop.permute.xlu0 %178
        %180 = vrot.lane.b32.xlu0 %v165, 1
        %v181 = vpop.permute.xlu0 %180
        %v182 = vmax.f32 %v158, %v167
        %v183 = vmax.f32 %v159, %v169
        %v184 = vmax.f32 %v160, %v171
        %v185 = vmax.f32 %v161, %v173
        %v186 = vmax.f32 %v162, %v175
        %v187 = vmax.f32 %v163, %v177
        %v188 = vmax.f32 %v164, %v179
        %v189 = vmax.f32 %v165, %v181
        %190 = vrot.lane.b32.xlu0 %v182, 1
        %v191 = vpop.permute.xlu0 %190
        %192 = vrot.lane.b32.xlu0 %v183, 1
        %v193 = vpop.permute.xlu0 %192
        %194 = vrot.lane.b32.xlu0 %v184, 1
        %v195 = vpop.permute.xlu0 %194
        %196 = vrot.lane.b32.xlu0 %v185, 1
        %v197 = vpop.permute.xlu0 %196
        %198 = vrot.lane.b32.xlu0 %v186, 1
        %v199 = vpop.permute.xlu0 %198
        %200 = vrot.lane.b32.xlu0 %v187, 1
        %v201 = vpop.permute.xlu0 %200
        %202 = vrot.lane.b32.xlu0 %v188, 1
        %v203 = vpop.permute.xlu0 %202
        %204 = vrot.lane.b32.xlu0 %v189, 1
        %v205 = vpop.permute.xlu0 %204
        %v206 = vmax.f32 %v182, %v191
        %v207 = vmax.f32 %v183, %v193
        %v208 = vmax.f32 %v184, %v195
        %v209 = vmax.f32 %v185, %v197
        %v210 = vmax.f32 %v186, %v199
        %v211 = vmax.f32 %v187, %v201
        %v212 = vmax.f32 %v188, %v203
        %v213 = vmax.f32 %v189, %v205
        %vm214 = vcmp.eq.f32.partialorder %v206, %v167
        %vm215 = vcmp.eq.f32.partialorder %v207, %v169
        %vm216 = vcmp.eq.f32.partialorder %v208, %v171
        %vm217 = vcmp.eq.f32.partialorder %v209, %v173
        %vm218 = vcmp.eq.f32.partialorder %v210, %v175
        %vm219 = vcmp.eq.f32.partialorder %v211, %v177
        %vm220 = vcmp.eq.f32.partialorder %v212, %v179
        %vm221 = vcmp.eq.f32.partialorder %v213, %v181
        %vm222 = vcmp.ge.s32.totalorder %v146, 1
        %vm223 = vcmp.lt.s32.totalorder %v146, 122
        %vm224 = vmand %vm222, %vm223
        %v225 = vsel %vm214, %v167, 0.0
        %v226 = vsel %vm215, %v169, 0.0
        %v227 = vsel %vm216, %v171, 0.0
        %v228 = vsel %vm217, %v173, 0.0
        %v229 = vsel %vm218, %v175, 0.0
        %v230 = vsel %vm219, %v177, 0.0
        %v231 = vsel %vm220, %v179, 0.0
        %v232 = vsel %vm221, %v181, 0.0
        %v233 = vsel %vm224, 1, 0
        %vm234 = vcmp.eq.s32.totalorder %v233, 1
        %v235 = vsel %vm234, %v225, -inf
        %v236 = vsel %vm234, %v226, -inf
        %v237 = vsel %vm234, %v227, -inf
        %v238 = vsel %vm234, %v228, -inf
        %v239 = vsel %vm234, %v229, -inf
        %v240 = vsel %vm234, %v230, -inf
        %v241 = vsel %vm234, %v231, -inf
        %v242 = vsel %vm234, %v232, -inf
        %243 = vmax.xlane.f32.xlu0 %v235
        %v244 = vpop.xlane.xlu0 %243
        %245 = vmax.xlane.f32.xlu0 %v236
        %v246 = vpop.xlane.xlu0 %245
        %247 = vmax.xlane.f32.xlu0 %v237
        %v248 = vpop.xlane.xlu0 %247
        %249 = vmax.xlane.f32.xlu0 %v238
        %v250 = vpop.xlane.xlu0 %249
        %251 = vmax.xlane.f32.xlu0 %v239
        %v252 = vpop.xlane.xlu0 %251
        %253 = vmax.xlane.f32.xlu0 %v240
        %v254 = vpop.xlane.xlu0 %253
        %255 = vmax.xlane.f32.xlu0 %v241
        %v256 = vpop.xlane.xlu0 %255
        %257 = vmax.xlane.f32.xlu0 %v242
        %v258 = vpop.xlane.xlu0 %257
        %vm259 = vcmp.eq.f32.partialorder %v235, %v244
        %vm260 = vcmp.eq.f32.partialorder %v236, %v246
        %vm261 = vcmp.eq.f32.partialorder %v237, %v248
        %vm262 = vcmp.eq.f32.partialorder %v238, %v250
        %vm263 = vcmp.eq.f32.partialorder %v239, %v252
        %vm264 = vcmp.eq.f32.partialorder %v240, %v254
        %vm265 = vcmp.eq.f32.partialorder %v241, %v256
        %vm266 = vcmp.eq.f32.partialorder %v242, %v258
        %v267 = vsel %vm259, %v146, 128
        %v268 = vsel %vm260, %v146, 128
        %v269 = vsel %vm261, %v146, 128
        %v270 = vsel %vm262, %v146, 128
        %v271 = vsel %vm263, %v146, 128
        %v272 = vsel %vm264, %v146, 128
        %v273 = vsel %vm265, %v146, 128
        %v274 = vsel %vm266, %v146, 128
        %v275 = vand.u32 %v267, 65535
        %v276 = vshra.s32 %v267, 16
        %v277 = vcvt.s32.f32 %v275
        %v278 = vcvt.s32.f32 %v276
        %279 = vmin.xlane.f32.xlu0 %v278
        %v280 = vpop.xlane.xlu0 %279
        %vm281 = vcmp.eq.f32.partialorder %v278, %v280
        %v282 = vsel %vm281, %v277, inf
        %283 = vmin.xlane.f32.xlu0 %v282
        %v284 = vpop.xlane.xlu0 %283
        %v285 = vcvt.f32.s32 %v284
        %v286 = vcvt.f32.s32 %v280
        %v287 = vshll.u32 %v286, 16
        %v288 = vadd.s32 %v287, %v285
        %v289 = vand.u32 %v268, 65535
        %v290 = vshra.s32 %v268, 16
        %v291 = vcvt.s32.f32 %v289
        %v292 = vcvt.s32.f32 %v290
        %293 = vmin.xlane.f32.xlu0 %v292
        %v294 = vpop.xlane.xlu0 %293
        %vm295 = vcmp.eq.f32.partialorder %v292, %v294
        %v296 = vsel %vm295, %v291, inf
        %297 = vmin.xlane.f32.xlu0 %v296
        %v298 = vpop.xlane.xlu0 %297
        %v299 = vcvt.f32.s32 %v298
        %v300 = vcvt.f32.s32 %v294
        %v301 = vshll.u32 %v300, 16
        %v302 = vadd.s32 %v301, %v299
        %v303 = vand.u32 %v269, 65535
        %v304 = vshra.s32 %v269, 16
        %v305 = vcvt.s32.f32 %v303
        %v306 = vcvt.s32.f32 %v304
        %307 = vmin.xlane.f32.xlu0 %v306
        %v308 = vpop.xlane.xlu0 %307
        %vm309 = vcmp.eq.f32.partialorder %v306, %v308
        %v310 = vsel %vm309, %v305, inf
        %311 = vmin.xlane.f32.xlu0 %v310
        %v312 = vpop.xlane.xlu0 %311
        %v313 = vcvt.f32.s32 %v312
        %v314 = vcvt.f32.s32 %v308
        %v315 = vshll.u32 %v314, 16
        %v316 = vadd.s32 %v315, %v313
        %v317 = vand.u32 %v270, 65535
        %v318 = vshra.s32 %v270, 16
        %v319 = vcvt.s32.f32 %v317
        %v320 = vcvt.s32.f32 %v318
        %321 = vmin.xlane.f32.xlu0 %v320
        %v322 = vpop.xlane.xlu0 %321
        %vm323 = vcmp.eq.f32.partialorder %v320, %v322
        %v324 = vsel %vm323, %v319, inf
        %325 = vmin.xlane.f32.xlu0 %v324
        %v326 = vpop.xlane.xlu0 %325
        %v327 = vcvt.f32.s32 %v326
        %v328 = vcvt.f32.s32 %v322
        %v329 = vshll.u32 %v328, 16
        %v330 = vadd.s32 %v329, %v327
        %v331 = vand.u32 %v271, 65535
        %v332 = vshra.s32 %v271, 16
        %v333 = vcvt.s32.f32 %v331
        %v334 = vcvt.s32.f32 %v332
        %335 = vmin.xlane.f32.xlu0 %v334
        %v336 = vpop.xlane.xlu0 %335
        %vm337 = vcmp.eq.f32.partialorder %v334, %v336
        %v338 = vsel %vm337, %v333, inf
        %339 = vmin.xlane.f32.xlu0 %v338
        %v340 = vpop.xlane.xlu0 %339
        %v341 = vcvt.f32.s32 %v340
        %v342 = vcvt.f32.s32 %v336
        %v343 = vshll.u32 %v342, 16
        %v344 = vadd.s32 %v343, %v341
        %v345 = vand.u32 %v272, 65535
        %v346 = vshra.s32 %v272, 16
        %v347 = vcvt.s32.f32 %v345
        %v348 = vcvt.s32.f32 %v346
        %349 = vmin.xlane.f32.xlu0 %v348
        %v350 = vpop.xlane.xlu0 %349
        %vm351 = vcmp.eq.f32.partialorder %v348, %v350
        %v352 = vsel %vm351, %v347, inf
        %353 = vmin.xlane.f32.xlu0 %v352
        %v354 = vpop.xlane.xlu0 %353
        %v355 = vcvt.f32.s32 %v354
        %v356 = vcvt.f32.s32 %v350
        %v357 = vshll.u32 %v356, 16
        %v358 = vadd.s32 %v357, %v355
        %v359 = vand.u32 %v273, 65535
        %v360 = vshra.s32 %v273, 16
        %v361 = vcvt.s32.f32 %v359
        %v362 = vcvt.s32.f32 %v360
        %363 = vmin.xlane.f32.xlu0 %v362
        %v364 = vpop.xlane.xlu0 %363
        %vm365 = vcmp.eq.f32.partialorder %v362, %v364
        %v366 = vsel %vm365, %v361, inf
        %367 = vmin.xlane.f32.xlu0 %v366
        %v368 = vpop.xlane.xlu0 %367
        %v369 = vcvt.f32.s32 %v368
        %v370 = vcvt.f32.s32 %v364
        %v371 = vshll.u32 %v370, 16
        %v372 = vadd.s32 %v371, %v369
        %v373 = vand.u32 %v274, 65535
        %v374 = vshra.s32 %v274, 16
        %v375 = vcvt.s32.f32 %v373
        %v376 = vcvt.s32.f32 %v374
        %377 = vmin.xlane.f32.xlu0 %v376
        %v378 = vpop.xlane.xlu0 %377
        %vm379 = vcmp.eq.f32.partialorder %v376, %v378
        %v380 = vsel %vm379, %v375, inf
        %381 = vmin.xlane.f32.xlu0 %v380
        %v382 = vpop.xlane.xlu0 %381
        %v383 = vcvt.f32.s32 %v382
        %v384 = vcvt.f32.s32 %v378
        %v385 = vshll.u32 %v384, 16
        %v386 = vadd.s32 %v385, %v383
        %v387 = vsub.s32 %v288, 1
        %v388 = vsub.s32 %v302, 1
        %v389 = vsub.s32 %v316, 1
        %v390 = vsub.s32 %v330, 1
        %v391 = vsub.s32 %v344, 1
        %v392 = vsub.s32 %v358, 1
        %v393 = vsub.s32 %v372, 1
        %v394 = vsub.s32 %v386, 1
        %vm395 = vcmp.eq.s32.totalorder %v146, %v288
        %vm396 = vcmp.eq.s32.totalorder %v146, %v302
        %vm397 = vcmp.eq.s32.totalorder %v146, %v316
        %vm398 = vcmp.eq.s32.totalorder %v146, %v330
        %vm399 = vcmp.eq.s32.totalorder %v146, %v344
        %vm400 = vcmp.eq.s32.totalorder %v146, %v358
        %vm401 = vcmp.eq.s32.totalorder %v146, %v372
        %vm402 = vcmp.eq.s32.totalorder %v146, %v386
        %v403 = vsel %vm395, -inf, %v235
        %v404 = vsel %vm396, -inf, %v236
        %v405 = vsel %vm397, -inf, %v237
        %v406 = vsel %vm398, -inf, %v238
        %v407 = vsel %vm399, -inf, %v239
        %v408 = vsel %vm400, -inf, %v240
        %v409 = vsel %vm401, -inf, %v241
        %v410 = vsel %vm402, -inf, %v242
        %411 = vmax.xlane.f32.xlu0 %v403
        %v412 = vpop.xlane.xlu0 %411
        %413 = vmax.xlane.f32.xlu0 %v404
        %v414 = vpop.xlane.xlu0 %413
        %415 = vmax.xlane.f32.xlu0 %v405
        %v416 = vpop.xlane.xlu0 %415
        %417 = vmax.xlane.f32.xlu0 %v406
        %v418 = vpop.xlane.xlu0 %417
        %419 = vmax.xlane.f32.xlu0 %v407
        %v420 = vpop.xlane.xlu0 %419
        %421 = vmax.xlane.f32.xlu0 %v408
        %v422 = vpop.xlane.xlu0 %421
        %423 = vmax.xlane.f32.xlu0 %v409
        %v424 = vpop.xlane.xlu0 %423
        %425 = vmax.xlane.f32.xlu0 %v410
        %v426 = vpop.xlane.xlu0 %425
        %vm427 = vcmp.eq.f32.partialorder %v403, %v412
        %vm428 = vcmp.eq.f32.partialorder %v404, %v414
        %vm429 = vcmp.eq.f32.partialorder %v405, %v416
        %vm430 = vcmp.eq.f32.partialorder %v406, %v418
        %vm431 = vcmp.eq.f32.partialorder %v407, %v420
        %vm432 = vcmp.eq.f32.partialorder %v408, %v422
        %vm433 = vcmp.eq.f32.partialorder %v409, %v424
        %vm434 = vcmp.eq.f32.partialorder %v410, %v426
        %v435 = vsel %vm427, %v146, 128
        %v436 = vsel %vm428, %v146, 128
        %v437 = vsel %vm429, %v146, 128
        %v438 = vsel %vm430, %v146, 128
        %v439 = vsel %vm431, %v146, 128
        %v440 = vsel %vm432, %v146, 128
        %v441 = vsel %vm433, %v146, 128
        %v442 = vsel %vm434, %v146, 128
        %v443 = vand.u32 %v435, 65535
        %v444 = vshra.s32 %v435, 16
        %v445 = vcvt.s32.f32 %v443
        %v446 = vcvt.s32.f32 %v444
        %447 = vmin.xlane.f32.xlu0 %v446
        %v448 = vpop.xlane.xlu0 %447
        %vm449 = vcmp.eq.f32.partialorder %v446, %v448
        %v450 = vsel %vm449, %v445, inf
        %451 = vmin.xlane.f32.xlu0 %v450
        %v452 = vpop.xlane.xlu0 %451
        %v453 = vcvt.f32.s32 %v452
        %v454 = vcvt.f32.s32 %v448
        %v455 = vshll.u32 %v454, 16
        %v456 = vadd.s32 %v455, %v453
        %v457 = vand.u32 %v436, 65535
        %v458 = vshra.s32 %v436, 16
        %v459 = vcvt.s32.f32 %v457
        %v460 = vcvt.s32.f32 %v458
        %461 = vmin.xlane.f32.xlu0 %v460
        %v462 = vpop.xlane.xlu0 %461
        %vm463 = vcmp.eq.f32.partialorder %v460, %v462
        %v464 = vsel %vm463, %v459, inf
        %465 = vmin.xlane.f32.xlu0 %v464
        %v466 = vpop.xlane.xlu0 %465
        %v467 = vcvt.f32.s32 %v466
        %v468 = vcvt.f32.s32 %v462
        %v469 = vshll.u32 %v468, 16
        %v470 = vadd.s32 %v469, %v467
        %v471 = vand.u32 %v437, 65535
        %v472 = vshra.s32 %v437, 16
        %v473 = vcvt.s32.f32 %v471
        %v474 = vcvt.s32.f32 %v472
        %475 = vmin.xlane.f32.xlu0 %v474
        %v476 = vpop.xlane.xlu0 %475
        %vm477 = vcmp.eq.f32.partialorder %v474, %v476
        %v478 = vsel %vm477, %v473, inf
        %479 = vmin.xlane.f32.xlu0 %v478
        %v480 = vpop.xlane.xlu0 %479
        %v481 = vcvt.f32.s32 %v480
        %v482 = vcvt.f32.s32 %v476
        %v483 = vshll.u32 %v482, 16
        %v484 = vadd.s32 %v483, %v481
        %v485 = vand.u32 %v438, 65535
        %v486 = vshra.s32 %v438, 16
        %v487 = vcvt.s32.f32 %v485
        %v488 = vcvt.s32.f32 %v486
        %489 = vmin.xlane.f32.xlu0 %v488
        %v490 = vpop.xlane.xlu0 %489
        %vm491 = vcmp.eq.f32.partialorder %v488, %v490
        %v492 = vsel %vm491, %v487, inf
        %493 = vmin.xlane.f32.xlu0 %v492
        %v494 = vpop.xlane.xlu0 %493
        %v495 = vcvt.f32.s32 %v494
        %v496 = vcvt.f32.s32 %v490
        %v497 = vshll.u32 %v496, 16
        %v498 = vadd.s32 %v497, %v495
        %v499 = vand.u32 %v439, 65535
        %v500 = vshra.s32 %v439, 16
        %v501 = vcvt.s32.f32 %v499
        %v502 = vcvt.s32.f32 %v500
        %503 = vmin.xlane.f32.xlu0 %v502
        %v504 = vpop.xlane.xlu0 %503
        %vm505 = vcmp.eq.f32.partialorder %v502, %v504
        %v506 = vsel %vm505, %v501, inf
        %507 = vmin.xlane.f32.xlu0 %v506
        %v508 = vpop.xlane.xlu0 %507
        %v509 = vcvt.f32.s32 %v508
        %v510 = vcvt.f32.s32 %v504
        %v511 = vshll.u32 %v510, 16
        %v512 = vadd.s32 %v511, %v509
        %v513 = vand.u32 %v440, 65535
        %v514 = vshra.s32 %v440, 16
        %v515 = vcvt.s32.f32 %v513
        %v516 = vcvt.s32.f32 %v514
        %517 = vmin.xlane.f32.xlu0 %v516
        %v518 = vpop.xlane.xlu0 %517
        %vm519 = vcmp.eq.f32.partialorder %v516, %v518
        %v520 = vsel %vm519, %v515, inf
        %521 = vmin.xlane.f32.xlu0 %v520
        %v522 = vpop.xlane.xlu0 %521
        %v523 = vcvt.f32.s32 %v522
        %v524 = vcvt.f32.s32 %v518
        %v525 = vshll.u32 %v524, 16
        %v526 = vadd.s32 %v525, %v523
        %v527 = vand.u32 %v441, 65535
        %v528 = vshra.s32 %v441, 16
        %v529 = vcvt.s32.f32 %v527
        %v530 = vcvt.s32.f32 %v528
        %531 = vmin.xlane.f32.xlu0 %v530
        %v532 = vpop.xlane.xlu0 %531
        %vm533 = vcmp.eq.f32.partialorder %v530, %v532
        %v534 = vsel %vm533, %v529, inf
        %535 = vmin.xlane.f32.xlu0 %v534
        %v536 = vpop.xlane.xlu0 %535
        %v537 = vcvt.f32.s32 %v536
        %v538 = vcvt.f32.s32 %v532
        %v539 = vshll.u32 %v538, 16
        %v540 = vadd.s32 %v539, %v537
        %v541 = vand.u32 %v442, 65535
        %v542 = vshra.s32 %v442, 16
        %v543 = vcvt.s32.f32 %v541
        %v544 = vcvt.s32.f32 %v542
        %545 = vmin.xlane.f32.xlu0 %v544
        %v546 = vpop.xlane.xlu0 %545
        %vm547 = vcmp.eq.f32.partialorder %v544, %v546
        %v548 = vsel %vm547, %v543, inf
        %549 = vmin.xlane.f32.xlu0 %v548
        %v550 = vpop.xlane.xlu0 %549
        %v551 = vcvt.f32.s32 %v550
        %v552 = vcvt.f32.s32 %v546
        %v553 = vshll.u32 %v552, 16
        %v554 = vadd.s32 %v553, %v551
        %v555 = vsub.s32 %v456, 1
        %v556 = vsub.s32 %v470, 1
        %v557 = vsub.s32 %v484, 1
        %v558 = vsub.s32 %v498, 1
        %v559 = vsub.s32 %v512, 1
        %v560 = vsub.s32 %v526, 1
        %v561 = vsub.s32 %v540, 1
        %v562 = vsub.s32 %v554, 1
        %vm563 = vcmp.eq.s32.totalorder %v146, 0
        %v564 = vsel %vm563, 1, 0
        %vm565 = vcmp.eq.s32.totalorder %v564, 1
        %v566 = vsel %vm565, %v244, 0.0
        %v567 = vsel %vm565, %v246, 0.0
        %v568 = vsel %vm565, %v248, 0.0
        %v569 = vsel %vm565, %v250, 0.0
        %v570 = vsel %vm565, %v252, 0.0
        %v571 = vsel %vm565, %v254, 0.0
        %v572 = vsel %vm565, %v256, 0.0
        %v573 = vsel %vm565, %v258, 0.0
        %vm574 = vcmp.eq.s32.totalorder %v146, 2
        %v575 = vsel %vm574, 1, 0
        %vm576 = vcmp.eq.s32.totalorder %v575, 1
        %v577 = vsel %vm576, %v387, 0
        %v578 = vsel %vm576, %v388, 0
        %v579 = vsel %vm576, %v389, 0
        %v580 = vsel %vm576, %v390, 0
        %v581 = vsel %vm576, %v391, 0
        %v582 = vsel %vm576, %v392, 0
        %v583 = vsel %vm576, %v393, 0
        %v584 = vsel %vm576, %v394, 0
        %vm585 = vcmp.eq.s32.totalorder %v146, 1
        %v586 = vsel %vm585, 1, 0
        %vm587 = vcmp.eq.s32.totalorder %v586, 1
        %v588 = vsel %vm587, %v412, %v566
        %v589 = vsel %vm587, %v414, %v567
        %v590 = vsel %vm587, %v416, %v568
        %v591 = vsel %vm587, %v418, %v569
        %v592 = vsel %vm587, %v420, %v570
        %v593 = vsel %vm587, %v422, %v571
        %v594 = vsel %vm587, %v424, %v572
        %v595 = vsel %vm587, %v426, %v573
        %vm596 = vcmp.eq.s32.totalorder %v146, 3
        %v597 = vsel %vm596, 1, 0
        %vm598 = vcmp.eq.s32.totalorder %v597, 1
        %v599 = vsel %vm598, %v555, %v577
        %v600 = vsel %vm598, %v556, %v578
        %v601 = vsel %vm598, %v557, %v579
        %v602 = vsel %vm598, %v558, %v580
        %v603 = vsel %vm598, %v559, %v581
        %v604 = vsel %vm598, %v560, %v582
        %v605 = vsel %vm598, %v561, %v583
        %v606 = vsel %vm598, %v562, %v584
        %vm607 = vcmp.lt.s32.totalorder %v146, 2
        %v616 = vsel %vm607, 1, 0
        %vm617 = vcmp.eq.s32.totalorder %v616, 1
        %v618 = vsel %vm617, %v588, %v599
        %v619 = vsel %vm617, %v589, %v600
        %v620 = vsel %vm617, %v590, %v601
        %v621 = vsel %vm617, %v591, %v602
        %v622 = vsel %vm617, %v592, %v603
        %v623 = vsel %vm617, %v593, %v604
        %v624 = vsel %vm617, %v594, %v605
        %v625 = vsel %vm617, %v595, %v606
        %626 = vst [vmem:[%s134] sm:$0xff] %v618
        %627 = vst [vmem:[%s134 + $0x8] sm:$0xff] %v619
        %628 = vst [vmem:[%s134 + $0x10] sm:$0xff] %v620
        %629 = vst [vmem:[%s134 + $0x18] sm:$0xff] %v621
        %630 = vst [vmem:[%s134 + $0x20] sm:$0xff] %v622
        %631 = vst [vmem:[%s134 + $0x28] sm:$0xff] %v623
        %632 = vst [vmem:[%s134 + $0x30] sm:$0xff] %v624
        %633 = vst [vmem:[%s134 + $0x38] sm:$0xff] %v625
        %s634 = sand.u32 %s52, 1
        %s635 = scalar_lea.sflag [#allocation4], %s634
        %s636 = sand.u32 %s52, 1
        %s637 = smul.addr %s636, 64
        %s638 = scalar_lea.vmem [#allocation5], %s637
        // Predicated region
        $region29: #{tpu_custom_call.1} parent=23 // pred_check
          %p639 = pneg %p62
        $region30: #{tpu_custom_call.1} parent=23 // pred_check_branch
          %641 = sbr.rel (%p639) target = $region32
        $region31: #{tpu_custom_call.1} parent=23 // pred_region
          %s642 = smul.u32 8, %s18
          %s644 = ssub.s32 1024, 1024
          %645 = vsyncadd %s635, %s644
          %s646 = smul.addr %s642, 128
          %s647 = scalar_lea.hbm %s1, %s646
          %s648 = sshll.u32 %s638, 4
          %s649 = int_to_ptr.vmem [resolvable:$true] %s648
          %654 = dma.vmem_to_hbm [thread:$0]  %s649, 1024, %s647, %s635, 128, 128, 8
        $region32: #{tpu_custom_call.1} parent=23 // pred_fallthru
          _
      $region24: #{tpu_custom_call.1} parent=5 // pred_fallthru
        _
      %p655 = scmp.le.s32.totalorder 2, %s13
      // Predicated region
      $region33: #{tpu_custom_call.1} parent=5 // pred_check
        %p656 = pneg %p655
      $region34: #{tpu_custom_call.1} parent=5 // pred_check_branch
        %658 = sbr.rel (%p656) target = $region36
      $region35: #{tpu_custom_call.1} parent=5 // pred_region
        %s659 = ssub.s32 %s13, 2
        // Predicated region
        $region37: #{tpu_custom_call.1} parent=35 // pred_check
          %p660 = pneg %p68
        $region38: #{tpu_custom_call.1} parent=35 // pred_check_branch
          %662 = sbr.rel (%p660) target = $region40
        $region39: #{tpu_custom_call.1} parent=35 // pred_region
          %s663 = sand.u32 %s53, 1
          %s664 = scalar_lea.sflag [#allocation4], %s663
          %s665 = sand.u32 %s53, 1
          %s666 = smul.addr %s665, 64
          %s667 = scalar_lea.vmem [#allocation5], %s666
          %668 = dma.done %s664, 1024
        $region40: #{tpu_custom_call.1} parent=35 // pred_fallthru
          _
      $region36: #{tpu_custom_call.1} parent=5 // pred_fallthru
        _
    $region6: #{tpu_custom_call.1} parent=1 // loop_footer
      %s17 = sadd.s32 1, %s13
    $region7: #{tpu_custom_call.1} parent=1 // loop_footer_branch
      %12 = sbr.rel target = $region3
    $region8: #{tpu_custom_call.1} parent=1 // loop_exit
      _
    %669 = vsyncpa [#allocation3], 1
    %s670 = scalar_lea.sflag [#allocation3], 1
    %671 = vsyncpa %s670, 1
    %672 = vsyncpa [#allocation4], 1
    %s673 = scalar_lea.sflag [#allocation4], 1
    %674 = vsyncpa %s673, 1

</llo_original>
